<compile_context>
chip_gen: v5e
topology: v5e:2x2
jax: 0.10.0
libtpu: 0.0.40
codegen_flags: <defaults>
</compile_context>

<pallas_src>
import jax
import jax.numpy as jnp
from jax.experimental import pallas as pl
from jax.experimental.pallas import tpu as pltpu


# ----------------------------------------------------------------------------
# Kernel: relu(z @ W^T + b), written directly as its two channel halves.
# ----------------------------------------------------------------------------
def _zmapping_kernel(z_ref, w_ref, b_ref, s1_ref, s2_ref):
    z = z_ref[...]                                   # (tb, Z)
    dn = (((1,), (1,)), ((), ()))                    # contract z dim1 with w dim1 (z @ Wh^T)
    h1 = jax.lax.dot_general(z, w_ref[0], dn,
                             preferred_element_type=jnp.float32) + b_ref[0]
    h2 = jax.lax.dot_general(z, w_ref[1], dn,
                             preferred_element_type=jnp.float32) + b_ref[1]
    s1_ref[...] = jnp.maximum(h1, 0.0)
    s2_ref[...] = jnp.maximum(h2, 0.0)


def _round_up(x, m):
    return -(-x // m) * m


def zmapping_pallas(z, lin_w, lin_b, *, tb=4096, min_split_batch=256,
                    vmem_budget_bytes=28 << 20):
    """ZMapping forward.

    z:     (B, Z)       latent codes
    lin_w: (2C, Z)      PyTorch nn.Linear weight layout
    lin_b: (2C,)        PyTorch nn.Linear bias
    returns (s, b) each of shape (B, C)   (== relu(linear(z)) split in half)
    """
    B, Z = z.shape
    twoC = lin_w.shape[0]
    C = twoC // 2

    # Present each half of the weight/bias with its own leading index so the
    # kernel addresses halves starting at lane 0 (pure-metadata reshapes, no
    # wrapper-side transpose).
    w3 = lin_w.reshape(2, C, Z)
    b3 = lin_b.reshape(2, 1, C)

    if B <= min_split_batch:
        # Single whole-array block: no grid ramp, no ragged block.
        tb_eff = B
    else:
        # VMEM-aware tile size: per batch row the pipeline holds (lane-padded
        # to 128, double-buffered) the z block plus both output half blocks.
        row_bytes = 4 * (_round_up(Z, 128) + 2 * _round_up(C, 128))
        tb_cap = max(8, (vmem_budget_bytes // (2 * row_bytes)) // 8 * 8)
        tb_eff = min(max(8, (tb // 8) * 8), tb_cap)
        # Guarantee >= 2 grid steps so v7x's two TensorCores both get work.
        tb_eff = min(tb_eff, _round_up(pl.cdiv(B, 2), 8))

    grid = (pl.cdiv(B, tb_eff),)   # ragged last block handled by Pallas

    s1, s2 = pl.pallas_call(
        _zmapping_kernel,
        out_shape=(
            jax.ShapeDtypeStruct((B, C), jnp.float32),
            jax.ShapeDtypeStruct((B, C), jnp.float32),
        ),
        grid=grid,
        in_specs=[
            pl.BlockSpec((tb_eff, Z), lambda i: (i, 0)),
            pl.BlockSpec((2, C, Z), lambda i: (0, 0, 0)),
            pl.BlockSpec((2, 1, C), lambda i: (0, 0, 0)),
        ],
        out_specs=(
            pl.BlockSpec((tb_eff, C), lambda i: (i, 0)),
            pl.BlockSpec((tb_eff, C), lambda i: (i, 0)),
        ),
        compiler_params=pltpu.CompilerParams(
            dimension_semantics=("parallel",),
            vmem_limit_bytes=40 << 20),
    )(z, w3, b3)

    return s1, s2


# ----------------------------------------------------------------------------
# Plain-JAX reference for verification
# ----------------------------------------------------------------------------
def zmapping_ref(z, lin_w, lin_b):
    out = jnp.maximum(z @ lin_w.T + lin_b, 0.0)
    C = lin_w.shape[0] // 2
    return out[:, :C], out[:, C:]


if __name__ == "__main__":
    B, Z, C = 2, 32, 8  # batch, z_dimension, output_channel

    key = jax.random.PRNGKey(0)
    kz, kw, kz2, kz3 = jax.random.split(key, 4)

    # nn.init.normal_(weight, std=0.02); bias = 0
    lin_w = 0.02 * jax.random.normal(kw, (2 * C, Z), jnp.float32)
    lin_b = jnp.zeros((2 * C,), jnp.float32)
    z = jax.random.normal(kz, (B, Z), jnp.float32)

    # 1) Small-batch (single-block) path
    s1, s2 = zmapping_pallas(z, lin_w, lin_b)
    (s1, s2) = jax.block_until_ready((s1, s2))
    r1, r2 = zmapping_ref(z, lin_w, lin_b)
    assert s1.shape == (B, C) and s2.shape == (B, C)
    assert jnp.allclose(s1, r1, atol=2e-3, rtol=2e-3)
    assert jnp.allclose(s2, r2, atol=2e-3, rtol=2e-3)

    # 2) Tiled path with a ragged last block (no pad / no post-slice),
    #    >= 2 parallel grid steps.
    B2 = 300
    z_big = jax.random.normal(kz2, (B2, Z), jnp.float32)
    t1, t2 = zmapping_pallas(z_big, lin_w, lin_b)
    (t1, t2) = jax.block_until_ready((t1, t2))
    q1, q2 = zmapping_ref(z_big, lin_w, lin_b)
    assert t1.shape == (B2, C) and t2.shape == (B2, C)
    assert jnp.allclose(t1, q1, atol=2e-3, rtol=2e-3)
    assert jnp.allclose(t2, q2, atol=2e-3, rtol=2e-3)

    # 3) Multi-step tiled path with an explicit small tile (exercises the
    #    batch-tile cap and ragged handling across several grid steps).
    B3 = 1000
    z_huge = jax.random.normal(kz3, (B3, Z), jnp.float32)
    u1, u2 = zmapping_pallas(z_huge, lin_w, lin_b, tb=256)
    (u1, u2) = jax.block_until_ready((u1, u2))
    p1, p2 = zmapping_ref(z_huge, lin_w, lin_b)
    assert u1.shape == (B3, C) and u2.shape == (B3, C)
    assert jnp.allclose(u1, p1, atol=2e-3, rtol=2e-3)
    assert jnp.allclose(u2, p2, atol=2e-3, rtol=2e-3)

    print("KERNEL_OK")
</pallas_src>

<mosaic_0001>
module attributes {stable_mosaic.version = 11 : i64} {
  func.func @_zmapping_kernel(%arg0: i32, %arg1: memref<2x32xf32, #tpu.memory_space<vmem>>, %arg2: memref<2x8x32xf32, #tpu.memory_space<vmem>>, %arg3: memref<2x1x8xf32, #tpu.memory_space<vmem>>, %arg4: memref<2x8xf32, #tpu.memory_space<vmem>>, %arg5: memref<2x8xf32, #tpu.memory_space<vmem>>) attributes {dimension_semantics = [#tpu.dimension_semantics<parallel>], iteration_bounds = array<i64: 1>, scalar_prefetch = 0 : i64, scratch_operands = 0 : i64, tpu.core_type = #tpu.core_type<tc>, window_params = [{transform_indices = @transform_0, window_bounds = array<i64: 2, 32>}, {pipeline_mode = #tpu.pipeline_mode<synchronous>, transform_indices = @transform_1, window_bounds = array<i64: 2, 8, 32>}, {pipeline_mode = #tpu.pipeline_mode<synchronous>, transform_indices = @transform_2, window_bounds = array<i64: 2, 1, 8>}, {transform_indices = @transform_3, window_bounds = array<i64: 2, 8>}, {transform_indices = @transform_4, window_bounds = array<i64: 2, 8>}]} {
    %c0 = arith.constant 0 : index
    %c0_0 = arith.constant 0 : index
    %0 = vector.load %arg1[%c0, %c0_0] : memref<2x32xf32, #tpu.memory_space<vmem>>, vector<2x32xf32>
    %c0_1 = arith.constant 0 : index
    %c0_2 = arith.constant 0 : index
    %c0_3 = arith.constant 0 : index
    %1 = vector.load %arg2[%c0_1, %c0_2, %c0_3] : memref<2x8x32xf32, #tpu.memory_space<vmem>>, vector<1x8x32xf32>
    %2 = vector.shape_cast %1 : vector<1x8x32xf32> to vector<8x32xf32>
    %cst = arith.constant dense<0.000000e+00> : vector<2x8xf32>
    %3 = tpu.matmul %0, %2, %cst {dimension_numbers = #tpu.dot_dimension_numbers<[1], [1], [0], [0], [0, 0, 1, 0], [], []>} : vector<2x32xf32>, vector<8x32xf32>, vector<2x8xf32> -> vector<2x8xf32>
    %c0_4 = arith.constant 0 : index
    %c0_5 = arith.constant 0 : index
    %c0_6 = arith.constant 0 : index
    %4 = vector.load %arg3[%c0_4, %c0_5, %c0_6] : memref<2x1x8xf32, #tpu.memory_space<vmem>>, vector<1x1x8xf32>
    %5 = vector.shape_cast %4 : vector<1x1x8xf32> to vector<1x8xf32>
    %6 = vector.broadcast %5 : vector<1x8xf32> to vector<2x8xf32>
    %7 = arith.addf %3, %6 : vector<2x8xf32>
    %c1 = arith.constant 1 : index
    %c0_7 = arith.constant 0 : index
    %c0_8 = arith.constant 0 : index
    %8 = vector.load %arg2[%c1, %c0_7, %c0_8] : memref<2x8x32xf32, #tpu.memory_space<vmem>>, vector<1x8x32xf32>
    %9 = vector.shape_cast %8 : vector<1x8x32xf32> to vector<8x32xf32>
    %cst_9 = arith.constant dense<0.000000e+00> : vector<2x8xf32>
    %10 = tpu.matmul %0, %9, %cst_9 {dimension_numbers = #tpu.dot_dimension_numbers<[1], [1], [0], [0], [0, 0, 1, 0], [], []>} : vector<2x32xf32>, vector<8x32xf32>, vector<2x8xf32> -> vector<2x8xf32>
    %c1_10 = arith.constant 1 : index
    %c0_11 = arith.constant 0 : index
    %c0_12 = arith.constant 0 : index
    %11 = vector.load %arg3[%c1_10, %c0_11, %c0_12] : memref<2x1x8xf32, #tpu.memory_space<vmem>>, vector<1x1x8xf32>
    %12 = vector.shape_cast %11 : vector<1x1x8xf32> to vector<1x8xf32>
    %13 = vector.broadcast %12 : vector<1x8xf32> to vector<2x8xf32>
    %14 = arith.addf %10, %13 : vector<2x8xf32>
    %cst_13 = arith.constant 0.000000e+00 : f32
    %15 = vector.broadcast %cst_13 : f32 to vector<2x8xf32>
    %16 = arith.maximumf %7, %15 : vector<2x8xf32>
    %c0_14 = arith.constant 0 : index
    %c0_15 = arith.constant 0 : index
    %17 = vector.load %arg4[%c0_14, %c0_15] : memref<2x8xf32, #tpu.memory_space<vmem>>, vector<2x8xf32>
    tpu.vector_store %arg4[%c0_14, %c0_15], %16 {strides = array<i32>} : memref<2x8xf32, #tpu.memory_space<vmem>>, vector<2x8xf32>,
    %cst_16 = arith.constant 0.000000e+00 : f32
    %18 = vector.broadcast %cst_16 : f32 to vector<2x8xf32>
    %19 = arith.maximumf %14, %18 : vector<2x8xf32>
    %c0_17 = arith.constant 0 : index
    %c0_18 = arith.constant 0 : index
    %20 = vector.load %arg5[%c0_17, %c0_18] : memref<2x8xf32, #tpu.memory_space<vmem>>, vector<2x8xf32>
    tpu.vector_store %arg5[%c0_17, %c0_18], %19 {strides = array<i32>} : memref<2x8xf32, #tpu.memory_space<vmem>>, vector<2x8xf32>,
    return
  }
  func.func @transform_0(%arg0: i32) -> (i32, i32) {
    %c0_i32 = arith.constant 0 : i32
    %c0_i32_0 = arith.constant 0 : i32
    return %arg0, %c0_i32 : i32, i32
  }
  func.func @transform_1(%arg0: i32) -> (i32, i32, i32) {
    %c0_i32 = arith.constant 0 : i32
    %c0_i32_0 = arith.constant 0 : i32
    %c0_i32_1 = arith.constant 0 : i32
    %c0_i32_2 = arith.constant 0 : i32
    return %c0_i32, %c0_i32_0, %c0_i32_1 : i32, i32, i32
  }
  func.func @transform_2(%arg0: i32) -> (i32, i32, i32) {
    %c0_i32 = arith.constant 0 : i32
    %c0_i32_0 = arith.constant 0 : i32
    %c0_i32_1 = arith.constant 0 : i32
    %c0_i32_2 = arith.constant 0 : i32
    return %c0_i32, %c0_i32_0, %c0_i32_1 : i32, i32, i32
  }
  func.func @transform_3(%arg0: i32) -> (i32, i32) {
    %c0_i32 = arith.constant 0 : i32
    %c0_i32_0 = arith.constant 0 : i32
    return %arg0, %c0_i32 : i32, i32
  }
  func.func @transform_4(%arg0: i32) -> (i32, i32) {
    %c0_i32 = arith.constant 0 : i32
    %c0_i32_0 = arith.constant 0 : i32
    return %arg0, %c0_i32 : i32, i32
  }
}

</mosaic_0001>

<llo_original>
// kernel: tpu_custom_call.1
$region0: #{tpu_custom_call.1}
  #allocation0 [shape = 'u32[]', space=smem, size = 0x4, offset = 0x4, fixed_abs, tag = 'smem constant byte address 0x4 - core index']
  #allocation1 [shape = 'u32[72,128]{1,0:T(1,128)}', space=vmem, size = 0x9000, scoped, tag = 'internal scratch']
  %s0 = inlined_call_operand.hbm [shape: f32[2,32], index: 0, kind: input, shape index: {}]
  %s1 = inlined_call_operand.hbm [shape: f32[2,8,32], index: 1, kind: input, shape index: {}]
  %s2 = inlined_call_operand.hbm [shape: f32[2,1,8], index: 2, kind: input, shape index: {}]
  %s3 = inlined_call_operand.hbm [shape: f32[2,8], index: 3, kind: output, shape index: {0}]
  %s4 = inlined_call_operand.hbm [shape: f32[2,8], index: 4, kind: output, shape index: {1}]
  %5 = xla_tuple %s3, %s4
  %s6 = sld [smem:[#allocation0]]
  $region42: #{tpu_custom_call.1} parent=0
    _
  %s8 = ssub.s32 1, %s6
  %s9 = scalar_select 0, %s8, %s6
  $region1: #{tpu_custom_call.1} parent=0
    #allocation2 [shape = 'u8[1024]{0}', space=vmem, size = 0x400, scoped, tag = 'input window, operand 0, single buffered']
    #allocation3 [shape = 's32[1]{0}', space=sflag, size = 0x4, scoped, tag = 'scoped memory for tpu_custom_call.1']
    #allocation4 [shape = 's32[1]{0}', space=sflag, size = 0x4, scoped, tag = 'scoped memory for tpu_custom_call.1']
    #allocation5 [shape = 'u8[8192]{0}', space=vmem, size = 0x2000, scoped, tag = 'input window, operand 1, single buffered']
    #allocation6 [shape = 's32[1]{0}', space=sflag, size = 0x4, scoped, tag = 'scoped memory for tpu_custom_call.1']
    #allocation7 [shape = 'u8[1024]{0}', space=vmem, size = 0x400, scoped, tag = 'input window, operand 2, single buffered']
    #allocation8 [shape = 'u8[1024]{0}', space=vmem, size = 0x400, scoped, tag = 'output window, operand 0, single buffered']
    #allocation9 [shape = 'u8[1024]{0}', space=vmem, size = 0x400, scoped, tag = 'output window, operand 1, single buffered']
    #allocation10 [shape = 's32[1]{0}', space=sflag, size = 0x4, scoped, tag = 'scoped memory for tpu_custom_call.1']
    %10 = vsyncpa [#allocation3], 0
    %11 = vsyncpa [#allocation6], 0
    %12 = vsyncpa [#allocation4], 0
    %13 = vsyncpa [#allocation10], 0
    // Predicated region
    $region2: #{tpu_custom_call.1} parent=1 // pred_check
      _
    $region3: #{tpu_custom_call.1} parent=1 // pred_check_branch
      %15 = sbr.rel (0) target = $region5
    $region4: #{tpu_custom_call.1} parent=1 // pred_region
      %17 = vsyncadd [#allocation3], 0
      %s19 = sshll.u32 %s0, 4
      %s20 = int_to_ptr.hbm [resolvable:$true] %s19
      %s21 = sshll.u32 [#allocation2], 4
      %s22 = int_to_ptr.vmem [resolvable:$true] %s21
      %24 = dma.hbm_to_vmem [thread:$0]  %s20, 32, %s22, [#allocation3]
    $region5: #{tpu_custom_call.1} parent=1 // pred_fallthru
      _
    // Predicated region
    $region6: #{tpu_custom_call.1} parent=1 // pred_check
      _
    $region7: #{tpu_custom_call.1} parent=1 // pred_check_branch
      %26 = sbr.rel (0) target = $region9
    $region8: #{tpu_custom_call.1} parent=1 // pred_region
      %28 = vsyncadd [#allocation6], 0
      %s29 = sshll.u32 %s1, 4
      %s30 = int_to_ptr.hbm [resolvable:$true] %s29
      %s31 = sshll.u32 [#allocation5], 4
      %s32 = int_to_ptr.vmem [resolvable:$true] %s31
      %37 = dma.hbm_to_vmem [thread:$0]  %s30, 256, %s32, [#allocation6], 128, 128, 8
    $region9: #{tpu_custom_call.1} parent=1 // pred_fallthru
      _
    // Predicated region
    $region10: #{tpu_custom_call.1} parent=1 // pred_check
      _
    $region11: #{tpu_custom_call.1} parent=1 // pred_check_branch
      %39 = sbr.rel (0) target = $region13
    $region12: #{tpu_custom_call.1} parent=1 // pred_region
      %41 = vsyncadd [#allocation6], 0
      %s42 = sshll.u32 %s2, 4
      %s43 = int_to_ptr.hbm [resolvable:$true] %s42
      %s44 = sshll.u32 [#allocation7], 4
      %s45 = int_to_ptr.vmem [resolvable:$true] %s44
      %50 = dma.hbm_to_vmem [thread:$0]  %s43, 32, %s45, [#allocation6], 16, 16, 1
    $region13: #{tpu_custom_call.1} parent=1 // pred_fallthru
      _
    // Predicated region
    $region14: #{tpu_custom_call.1} parent=1 // pred_check
      _
    $region15: #{tpu_custom_call.1} parent=1 // pred_check_branch
      %52 = sbr.rel (0) target = $region17
    $region16: #{tpu_custom_call.1} parent=1 // pred_region
      %54 = dma.done [#allocation3], 32
    $region17: #{tpu_custom_call.1} parent=1 // pred_fallthru
      _
    // Predicated region
    $region18: #{tpu_custom_call.1} parent=1 // pred_check
      _
    $region19: #{tpu_custom_call.1} parent=1 // pred_check_branch
      %56 = sbr.rel (0) target = $region21
    $region20: #{tpu_custom_call.1} parent=1 // pred_region
      %58 = dma.done [#allocation6], 256
    $region21: #{tpu_custom_call.1} parent=1 // pred_fallthru
      _
    // Predicated region
    $region22: #{tpu_custom_call.1} parent=1 // pred_check
      _
    $region23: #{tpu_custom_call.1} parent=1 // pred_check_branch
      %60 = sbr.rel (0) target = $region25
    $region24: #{tpu_custom_call.1} parent=1 // pred_region
      %62 = dma.done [#allocation6], 32
    $region25: #{tpu_custom_call.1} parent=1 // pred_fallthru
      _
    %v63 = vld [vmem:[#allocation2] sm:$0x3]
    %v64 = vld [vmem:[#allocation5] sm:$0xff]
    %v65 = vld [vmem:[#allocation7] sm:$0x1]
    %v67 = vperm.slane %v65, 0
    %vm69 = vcmask 261120
    %v71 = vsel %vm69, %v63, 0
    %v74 = vsel %vm69, %v64, 0
    %76 = vmatpush.xpose.msra.mxu0 0.0
    %77 = vmatpush.xpose.msra.mxu0 0.0
    %78 = vmatpush.xpose.msra.mxu0 0.0
    %79 = vmatpush.xpose.msra.mxu0 0.0
    %80 = vmatpush.xpose.msra.mxu0 0.0
    %81 = vmatpush.xpose.msra.mxu0 0.0
    %82 = vmatpush.xpose.msra.mxu0 0.0
    %83 = vmatpush.xpose.msra.mxu0 0.0
    %84 = vmatpush.xpose.msra.mxu0 0.0
    %85 = vmatpush.xpose.msra.mxu0 0.0
    %86 = vmatpush.xpose.msra.mxu0 0.0
    %87 = vmatpush.xpose.msra.mxu0 0.0
    %88 = vmatpush.xpose.msra.mxu0 0.0
    %89 = vmatpush.xpose.msra.mxu0 0.0
    %90 = vmatpush.xpose.msra.mxu0 0.0
    %91 = vmatpush.xpose.msra.mxu0 %v74
    %92 = vmatmul.f32.gmra.mxu0 %v71
    %v93 = vpop.f32.mrf.mxu0
    %v94 = vadd.f32 %v67, %v93
    %95 = vdwg.mxu0
    %s96 = scalar_lea.vmem [#allocation5], 8
    %v97 = vld [vmem:[%s96] sm:$0xff]
    %s98 = scalar_lea.vmem [#allocation7], 1
    %v99 = vld [vmem:[%s98] sm:$0x1]
    %v101 = vperm.slane %v99, 0
    %v104 = vsel %vm69, %v97, 0
    %106 = vmatpush.xpose.msra.mxu0 0.0
    %107 = vmatpush.xpose.msra.mxu0 0.0
    %108 = vmatpush.xpose.msra.mxu0 0.0
    %109 = vmatpush.xpose.msra.mxu0 0.0
    %110 = vmatpush.xpose.msra.mxu0 0.0
    %111 = vmatpush.xpose.msra.mxu0 0.0
    %112 = vmatpush.xpose.msra.mxu0 0.0
    %113 = vmatpush.xpose.msra.mxu0 0.0
    %114 = vmatpush.xpose.msra.mxu0 0.0
    %115 = vmatpush.xpose.msra.mxu0 0.0
    %116 = vmatpush.xpose.msra.mxu0 0.0
    %117 = vmatpush.xpose.msra.mxu0 0.0
    %118 = vmatpush.xpose.msra.mxu0 0.0
    %119 = vmatpush.xpose.msra.mxu0 0.0
    %120 = vmatpush.xpose.msra.mxu0 0.0
    %121 = vmatpush.xpose.msra.mxu0 %v104
    %122 = vmatmul.f32.gmra.mxu0 %v71
    %v123 = vpop.f32.mrf.mxu0
    %v124 = vadd.f32 %v101, %v123
    %125 = vdwg.mxu0
    %v126 = vmax.f32 %v94, 0.0
    %vm127 = vcmask 58368
    %128 = vst.msk [vmem:[#allocation8] sm:$0x3] %vm127, %v126
    %v129 = vmax.f32 %v124, 0.0
    %130 = vst.msk [vmem:[#allocation9] sm:$0x3] %vm127, %v129
    // Predicated region
    $region26: #{tpu_custom_call.1} parent=1 // pred_check
      _
    $region27: #{tpu_custom_call.1} parent=1 // pred_check_branch
      %132 = sbr.rel (0) target = $region29
    $region28: #{tpu_custom_call.1} parent=1 // pred_region
      %134 = vsyncadd [#allocation4], 0
      %s136 = sshll.u32 [#allocation8], 4
      %s137 = int_to_ptr.vmem [resolvable:$true] %s136
      %s138 = sshll.u32 %s3, 4
      %s139 = int_to_ptr.hbm [resolvable:$true] %s138
      %141 = dma.vmem_to_hbm [thread:$0]  %s137, 32, %s139, [#allocation4]
    $region29: #{tpu_custom_call.1} parent=1 // pred_fallthru
      _
    // Predicated region
    $region30: #{tpu_custom_call.1} parent=1 // pred_check
      _
    $region31: #{tpu_custom_call.1} parent=1 // pred_check_branch
      %143 = sbr.rel (0) target = $region33
    $region32: #{tpu_custom_call.1} parent=1 // pred_region
      %145 = vsyncadd [#allocation10], 0
      %s147 = sshll.u32 [#allocation9], 4
      %s148 = int_to_ptr.vmem [resolvable:$true] %s147
      %s149 = sshll.u32 %s4, 4
      %s150 = int_to_ptr.hbm [resolvable:$true] %s149
      %152 = dma.vmem_to_hbm [thread:$0]  %s148, 32, %s150, [#allocation10]
    $region33: #{tpu_custom_call.1} parent=1 // pred_fallthru
      _
    // Predicated region
    $region34: #{tpu_custom_call.1} parent=1 // pred_check
      _
    $region35: #{tpu_custom_call.1} parent=1 // pred_check_branch
      %154 = sbr.rel (0) target = $region37
    $region36: #{tpu_custom_call.1} parent=1 // pred_region
      %156 = dma.done [#allocation4], 32
    $region37: #{tpu_custom_call.1} parent=1 // pred_fallthru
      _
    // Predicated region
    $region38: #{tpu_custom_call.1} parent=1 // pred_check
      _
    $region39: #{tpu_custom_call.1} parent=1 // pred_check_branch
      %158 = sbr.rel (0) target = $region41
    $region40: #{tpu_custom_call.1} parent=1 // pred_region
      %160 = dma.done [#allocation10], 32
    $region41: #{tpu_custom_call.1} parent=1 // pred_fallthru
      _
    %161 = vsyncpa [#allocation3], 1
    %162 = vsyncpa [#allocation6], 1
    %163 = vsyncpa [#allocation4], 1
    %164 = vsyncpa [#allocation10], 1

</llo_original>
